<compile_context>
chip_gen: v7x
topology: tpu7x:2x2x1
jax: 0.10.0
libtpu: 0.0.40
codegen_flags: <defaults>
</compile_context>

<pallas_src>
import jax
import jax.numpy as jnp
from jax.experimental import pallas as pl
from jax.experimental.pallas import tpu as pltpu


_MAX_TILE = 1024  # batch rows per grid step (amortizes ~0.35us/step overhead)


def _leaky_relu(x, slope=0.01):
    return jnp.where(x > 0, x, slope * x)


def _round_up(x, m):
    return ((x + m - 1) // m) * m


def _choose_batch_tile(B):
    """Pick the batch tile: big (overhead-bound kernel), 8-row aligned, and
    with >= 2 grid steps for B > 8 so v7x can use both TensorCores."""
    if B <= 8:
        return B  # single tiny block; full-array dim satisfies the (8,128) rule
    half = _round_up(pl.cdiv(B, 2), 8)
    return max(8, min(_MAX_TILE, half, _round_up(B, 8)))


def actor_ll_kernel(x_ref, w1_ref, b1_ref, w2_ref, b2_ref, w3_ref, b3_ref,
                    scale_ref, bias_ref, out_ref):
    x = x_ref[...]
    w_dtype = w1_ref.dtype  # f32 or bf16; activations cast to match for the MXU

    # layer1 + leaky_relu (accumulate in f32)
    h1 = jnp.dot(x.astype(w_dtype), w1_ref[...],
                 preferred_element_type=jnp.float32) + b1_ref[...]
    h1 = _leaky_relu(h1)

    # layer2 + leaky_relu
    h2 = jnp.dot(h1.astype(w_dtype), w2_ref[...],
                 preferred_element_type=jnp.float32) + b2_ref[...]
    h2 = _leaky_relu(h2)

    # layer3: constants pre-folded so sigmoid+scale+bias is one tanh + one FMA.
    #   sigmoid(z)*s + b == tanh(0.5 z)*(0.5 s) + (0.5 s + b),
    # with w3_ref = 0.5*w3, b3_ref = 0.5*b3 folded at param-prep time.
    y = jnp.tanh(jnp.dot(h2.astype(w_dtype), w3_ref[...],
                         preferred_element_type=jnp.float32) + b3_ref[...])
    out_ref[...] = y * scale_ref[...] + bias_ref[...]


def fold_actor_constants(params, n_actions, matmul_dtype=jnp.float32):
    """One-time param prep: fold the sigmoid identity and the mean/std
    scale/bias epilogue constants into the layer-3 weights and a single
    fused (1, 2*n_actions) scale/bias row. Optionally cast weights to bf16
    for the MXU (biases / epilogue stay f32)."""
    assert n_actions == 2, "module's scale/bias factors are hard-coded for n_actions == 2"
    out_dim = 2 * n_actions
    scale_factor = jnp.array([1.5, 2.0], jnp.float32)
    bias_factor = jnp.array([-0.5, -1.0], jnp.float32)
    scale_full = jnp.concatenate([scale_factor, jnp.ones((n_actions,), jnp.float32)])
    bias_full = jnp.concatenate([bias_factor, jnp.full((n_actions,), 0.01, jnp.float32)])
    return {
        "w1": params["w1"].astype(matmul_dtype),
        "b1": params["b1"],
        "w2": params["w2"].astype(matmul_dtype),
        "b2": params["b2"],
        "w3": (0.5 * params["w3"]).astype(matmul_dtype),
        "b3": 0.5 * params["b3"],
        "scale": (0.5 * scale_full).reshape(1, out_dim),
        "bias": (0.5 * scale_full + bias_full).reshape(1, out_dim),
    }


def actor_ll_forward(x, folded, n_actions):
    """Actor_LL forward as one Pallas kernel.

    x: [B, n_states] float32
    folded: output of fold_actor_constants (weights [in, out], biases [1, out],
            fused scale/bias rows [1, 2*n_actions])
    returns (mean [B, n_actions], std [B, n_actions])
    """
    B, n_states = x.shape
    H = folded["w1"].shape[1]
    out_dim = 2 * n_actions

    TB = _choose_batch_tile(B)
    grid = (pl.cdiv(B, TB),)  # partial last block tolerated (rows clipped on store)

    const_map = lambda i: (0, 0)
    in_specs = [
        pl.BlockSpec((TB, n_states), lambda i: (i, 0)),   # x (contiguous rows)
        pl.BlockSpec((n_states, H), const_map),           # w1 (VMEM-resident)
        pl.BlockSpec((1, H), const_map),                  # b1
        # NOTE: whole w2 resident per step. Fine for small/medium H; for
        # H >= ~2048 (v7x has 64 MiB VMEM) switch to a K-tiled grid axis or
        # pipeline_mode=pl.Buffered(1) on the constant-index weight specs.
        pl.BlockSpec((H, H), const_map),                  # w2
        pl.BlockSpec((1, H), const_map),                  # b2
        pl.BlockSpec((H, out_dim), const_map),            # w3 (pre-scaled by 0.5)
        pl.BlockSpec((1, out_dim), const_map),            # b3 (pre-scaled by 0.5)
        pl.BlockSpec((1, out_dim), const_map),            # fused scale row
        pl.BlockSpec((1, out_dim), const_map),            # fused bias row
    ]
    out_spec = pl.BlockSpec((TB, out_dim), lambda i: (i, 0))

    flops = 2 * B * (n_states * H + H * H + H * out_dim)
    bytes_accessed = 4 * (
        B * n_states + n_states * H + H + H * H + H + H * out_dim + out_dim
        + 2 * out_dim + B * out_dim)
    cost = pl.CostEstimate(flops=flops,
                           transcendentals=B * out_dim,
                           bytes_accessed=bytes_accessed)

    out = pl.pallas_call(
        actor_ll_kernel,
        out_shape=jax.ShapeDtypeStruct((B, out_dim), jnp.float32),
        grid=grid,
        in_specs=in_specs,
        out_specs=out_spec,
        compiler_params=pltpu.CompilerParams(
            dimension_semantics=("parallel",),
            # Explicit limit: safe headroom on all generations (v5e scoped
            # default is only 16 MiB); actual use at TB=1024 is ~3 MiB.
            vmem_limit_bytes=32 * 1024 * 1024,
        ),
        cost_estimate=cost,
    )(x, folded["w1"], folded["b1"], folded["w2"], folded["b2"],
      folded["w3"], folded["b3"], folded["scale"], folded["bias"])

    # Free slice in XLA: split fused output into (mean, std).
    return out[:, :n_actions], out[:, n_actions:]


def init_params(key, n_states, n_actions, hidden):
    """Deterministic init mimicking nn.Linear (uniform +-1/sqrt(fan_in)),
    with weights stored pre-transposed as [in_features, out_features]."""
    keys = jax.random.split(key, 6)

    def linear(kw, kb, fan_in, fan_out):
        bound = 1.0 / jnp.sqrt(jnp.float32(fan_in))
        w = jax.random.uniform(kw, (fan_in, fan_out), jnp.float32, -bound, bound)
        b = jax.random.uniform(kb, (1, fan_out), jnp.float32, -bound, bound)
        return w, b

    w1, b1 = linear(keys[0], keys[1], n_states, hidden)
    w2, b2 = linear(keys[2], keys[3], hidden, hidden)
    w3, b3 = linear(keys[4], keys[5], hidden, n_actions * 2)
    return {"w1": w1, "b1": b1, "w2": w2, "b2": b2, "w3": w3, "b3": b3}


def actor_ll_ref(x, params, n_actions):
    """Pure-JAX reference (mirrors the PyTorch module exactly)."""
    h1 = jax.nn.leaky_relu(x @ params["w1"] + params["b1"], 0.01)
    h2 = jax.nn.leaky_relu(h1 @ params["w2"] + params["b2"], 0.01)
    y = jax.nn.sigmoid(h2 @ params["w3"] + params["b3"])
    scale = jnp.array([1.5, 2.0], dtype=jnp.float32)
    bias = jnp.array([-0.5, -1.0], dtype=jnp.float32)
    return (y[:, :n_actions] * scale + bias, y[:, n_actions:] + 0.01)


if __name__ == "__main__":
    # Small shapes consistent with the module (scale/bias factors have length 2
    # -> n_actions = 2).
    n_states, n_actions, hidden = 16, 2, 32

    key = jax.random.PRNGKey(0)
    k_x, k_p = jax.random.split(key)
    params = init_params(k_p, n_states, n_actions, hidden)
    folded = fold_actor_constants(params, n_actions)  # one-time prep (f32 MXU path)

    # B=8: single full-array block. B=40: multi-step parallel grid (v7x 2-TC
    # path) with a partial last block.
    for B in (8, 40):
        x = jax.random.normal(jax.random.fold_in(k_x, B), (B, n_states), jnp.float32)
        mean, std = actor_ll_forward(x, folded, n_actions)
        jax.block_until_ready((mean, std))

        mean_ref, std_ref = actor_ll_ref(x, params, n_actions)
        assert jnp.allclose(mean, mean_ref, atol=1e-5), f"mean mismatch at B={B}"
        assert jnp.allclose(std, std_ref, atol=1e-5), f"std mismatch at B={B}"

    print("KERNEL_OK")
</pallas_src>

<mosaic_0001>
module attributes {stable_mosaic.version = 11 : i64} {
  func.func @actor_ll_kernel(%arg0: i32, %arg1: memref<8x16xf32, #tpu.memory_space<vmem>>, %arg2: memref<16x32xf32, #tpu.memory_space<vmem>>, %arg3: memref<1x32xf32, #tpu.memory_space<vmem>>, %arg4: memref<32x32xf32, #tpu.memory_space<vmem>>, %arg5: memref<1x32xf32, #tpu.memory_space<vmem>>, %arg6: memref<32x4xf32, #tpu.memory_space<vmem>>, %arg7: memref<1x4xf32, #tpu.memory_space<vmem>>, %arg8: memref<1x4xf32, #tpu.memory_space<vmem>>, %arg9: memref<1x4xf32, #tpu.memory_space<vmem>>, %arg10: memref<8x4xf32, #tpu.memory_space<vmem>>) attributes {dimension_semantics = [#tpu.dimension_semantics<parallel>], iteration_bounds = array<i64: 1>, scalar_prefetch = 0 : i64, scratch_operands = 0 : i64, tpu.core_type = #tpu.core_type<tc>, window_params = [{transform_indices = @transform_0, window_bounds = array<i64: 8, 16>}, {pipeline_mode = #tpu.pipeline_mode<synchronous>, transform_indices = @transform_1, window_bounds = array<i64: 16, 32>}, {pipeline_mode = #tpu.pipeline_mode<synchronous>, transform_indices = @transform_2, window_bounds = array<i64: 1, 32>}, {pipeline_mode = #tpu.pipeline_mode<synchronous>, transform_indices = @transform_3, window_bounds = array<i64: 32, 32>}, {pipeline_mode = #tpu.pipeline_mode<synchronous>, transform_indices = @transform_4, window_bounds = array<i64: 1, 32>}, {pipeline_mode = #tpu.pipeline_mode<synchronous>, transform_indices = @transform_5, window_bounds = array<i64: 32, 4>}, {pipeline_mode = #tpu.pipeline_mode<synchronous>, transform_indices = @transform_6, window_bounds = array<i64: 1, 4>}, {pipeline_mode = #tpu.pipeline_mode<synchronous>, transform_indices = @transform_7, window_bounds = array<i64: 1, 4>}, {pipeline_mode = #tpu.pipeline_mode<synchronous>, transform_indices = @transform_8, window_bounds = array<i64: 1, 4>}, {transform_indices = @transform_9, window_bounds = array<i64: 8, 4>}]} {
    %c0 = arith.constant 0 : index
    %c0_0 = arith.constant 0 : index
    %0 = vector.load %arg1[%c0, %c0_0] : memref<8x16xf32, #tpu.memory_space<vmem>>, vector<8x16xf32>
    %c0_1 = arith.constant 0 : index
    %c0_2 = arith.constant 0 : index
    %1 = vector.load %arg2[%c0_1, %c0_2] : memref<16x32xf32, #tpu.memory_space<vmem>>, vector<16x32xf32>
    %cst = arith.constant dense<0.000000e+00> : vector<8x32xf32>
    %2 = tpu.matmul %0, %1, %cst {dimension_numbers = #tpu.dot_dimension_numbers<[1], [0], [0], [1], [0, 0, 1, 1], [], []>} : vector<8x16xf32>, vector<16x32xf32>, vector<8x32xf32> -> vector<8x32xf32>
    %c0_3 = arith.constant 0 : index
    %c0_4 = arith.constant 0 : index
    %3 = vector.load %arg3[%c0_3, %c0_4] : memref<1x32xf32, #tpu.memory_space<vmem>>, vector<1x32xf32>
    %4 = vector.broadcast %3 : vector<1x32xf32> to vector<8x32xf32>
    %5 = arith.addf %2, %4 : vector<8x32xf32>
    %cst_5 = arith.constant 0.000000e+00 : f32
    %6 = vector.broadcast %cst_5 : f32 to vector<8x32xf32>
    %7 = arith.cmpf ogt, %5, %6 : vector<8x32xf32>
    %cst_6 = arith.constant 0.00999999977 : f32
    %8 = vector.broadcast %cst_6 : f32 to vector<8x32xf32>
    %9 = arith.mulf %8, %5 : vector<8x32xf32>
    %10 = arith.select %7, %5, %9 : vector<8x32xi1>, vector<8x32xf32>
    %c0_7 = arith.constant 0 : index
    %c0_8 = arith.constant 0 : index
    %11 = vector.load %arg4[%c0_7, %c0_8] : memref<32x32xf32, #tpu.memory_space<vmem>>, vector<32x32xf32>
    %cst_9 = arith.constant dense<0.000000e+00> : vector<8x32xf32>
    %12 = tpu.matmul %10, %11, %cst_9 {dimension_numbers = #tpu.dot_dimension_numbers<[1], [0], [0], [1], [0, 0, 1, 1], [], []>} : vector<8x32xf32>, vector<32x32xf32>, vector<8x32xf32> -> vector<8x32xf32>
    %c0_10 = arith.constant 0 : index
    %c0_11 = arith.constant 0 : index
    %13 = vector.load %arg5[%c0_10, %c0_11] : memref<1x32xf32, #tpu.memory_space<vmem>>, vector<1x32xf32>
    %14 = vector.broadcast %13 : vector<1x32xf32> to vector<8x32xf32>
    %15 = arith.addf %12, %14 : vector<8x32xf32>
    %cst_12 = arith.constant 0.000000e+00 : f32
    %16 = vector.broadcast %cst_12 : f32 to vector<8x32xf32>
    %17 = arith.cmpf ogt, %15, %16 : vector<8x32xf32>
    %cst_13 = arith.constant 0.00999999977 : f32
    %18 = vector.broadcast %cst_13 : f32 to vector<8x32xf32>
    %19 = arith.mulf %18, %15 : vector<8x32xf32>
    %20 = arith.select %17, %15, %19 : vector<8x32xi1>, vector<8x32xf32>
    %c0_14 = arith.constant 0 : index
    %c0_15 = arith.constant 0 : index
    %21 = vector.load %arg6[%c0_14, %c0_15] : memref<32x4xf32, #tpu.memory_space<vmem>>, vector<32x4xf32>
    %cst_16 = arith.constant dense<0.000000e+00> : vector<8x4xf32>
    %22 = tpu.matmul %20, %21, %cst_16 {dimension_numbers = #tpu.dot_dimension_numbers<[1], [0], [0], [1], [0, 0, 1, 1], [], []>} : vector<8x32xf32>, vector<32x4xf32>, vector<8x4xf32> -> vector<8x4xf32>
    %c0_17 = arith.constant 0 : index
    %c0_18 = arith.constant 0 : index
    %23 = vector.load %arg7[%c0_17, %c0_18] : memref<1x4xf32, #tpu.memory_space<vmem>>, vector<1x4xf32>
    %24 = vector.broadcast %23 : vector<1x4xf32> to vector<8x4xf32>
    %25 = arith.addf %22, %24 : vector<8x4xf32>
    %26 = math.tanh %25 : vector<8x4xf32>
    %c0_19 = arith.constant 0 : index
    %c0_20 = arith.constant 0 : index
    %27 = vector.load %arg8[%c0_19, %c0_20] : memref<1x4xf32, #tpu.memory_space<vmem>>, vector<1x4xf32>
    %28 = vector.broadcast %27 : vector<1x4xf32> to vector<8x4xf32>
    %29 = arith.mulf %26, %28 : vector<8x4xf32>
    %c0_21 = arith.constant 0 : index
    %c0_22 = arith.constant 0 : index
    %30 = vector.load %arg9[%c0_21, %c0_22] : memref<1x4xf32, #tpu.memory_space<vmem>>, vector<1x4xf32>
    %31 = vector.broadcast %30 : vector<1x4xf32> to vector<8x4xf32>
    %32 = arith.addf %29, %31 : vector<8x4xf32>
    %c0_23 = arith.constant 0 : index
    %c0_24 = arith.constant 0 : index
    %33 = vector.load %arg10[%c0_23, %c0_24] : memref<8x4xf32, #tpu.memory_space<vmem>>, vector<8x4xf32>
    tpu.vector_store %arg10[%c0_23, %c0_24], %32 {strides = array<i32>} : memref<8x4xf32, #tpu.memory_space<vmem>>, vector<8x4xf32>,
    return
  }
  func.func @transform_0(%arg0: i32) -> (i32, i32) {
    %c0_i32 = arith.constant 0 : i32
    %c0_i32_0 = arith.constant 0 : i32
    return %arg0, %c0_i32 : i32, i32
  }
  func.func @transform_1(%arg0: i32) -> (i32, i32) {
    %c0_i32 = arith.constant 0 : i32
    %c0_i32_0 = arith.constant 0 : i32
    %c0_i32_1 = arith.constant 0 : i32
    return %c0_i32, %c0_i32_0 : i32, i32
  }
  func.func @transform_2(%arg0: i32) -> (i32, i32) {
    %c0_i32 = arith.constant 0 : i32
    %c0_i32_0 = arith.constant 0 : i32
    %c0_i32_1 = arith.constant 0 : i32
    return %c0_i32, %c0_i32_0 : i32, i32
  }
  func.func @transform_3(%arg0: i32) -> (i32, i32) {
    %c0_i32 = arith.constant 0 : i32
    %c0_i32_0 = arith.constant 0 : i32
    %c0_i32_1 = arith.constant 0 : i32
    return %c0_i32, %c0_i32_0 : i32, i32
  }
  func.func @transform_4(%arg0: i32) -> (i32, i32) {
    %c0_i32 = arith.constant 0 : i32
    %c0_i32_0 = arith.constant 0 : i32
    %c0_i32_1 = arith.constant 0 : i32
    return %c0_i32, %c0_i32_0 : i32, i32
  }
  func.func @transform_5(%arg0: i32) -> (i32, i32) {
    %c0_i32 = arith.constant 0 : i32
    %c0_i32_0 = arith.constant 0 : i32
    %c0_i32_1 = arith.constant 0 : i32
    return %c0_i32, %c0_i32_0 : i32, i32
  }
  func.func @transform_6(%arg0: i32) -> (i32, i32) {
    %c0_i32 = arith.constant 0 : i32
    %c0_i32_0 = arith.constant 0 : i32
    %c0_i32_1 = arith.constant 0 : i32
    return %c0_i32, %c0_i32_0 : i32, i32
  }
  func.func @transform_7(%arg0: i32) -> (i32, i32) {
    %c0_i32 = arith.constant 0 : i32
    %c0_i32_0 = arith.constant 0 : i32
    %c0_i32_1 = arith.constant 0 : i32
    return %c0_i32, %c0_i32_0 : i32, i32
  }
  func.func @transform_8(%arg0: i32) -> (i32, i32) {
    %c0_i32 = arith.constant 0 : i32
    %c0_i32_0 = arith.constant 0 : i32
    %c0_i32_1 = arith.constant 0 : i32
    return %c0_i32, %c0_i32_0 : i32, i32
  }
  func.func @transform_9(%arg0: i32) -> (i32, i32) {
    %c0_i32 = arith.constant 0 : i32
    %c0_i32_0 = arith.constant 0 : i32
    return %arg0, %c0_i32 : i32, i32
  }
}

</mosaic_0001>

<llo_original>
// kernel: tpu_custom_call.1
$region0: #{tpu_custom_call.1}
  #allocation0 [shape = 'u32[]', space=smem, size = 0x4, offset = 0x4, fixed_abs, tag = 'smem constant byte address 0x4 - core index']
  #allocation1 [shape = 'u32[144,128]{1,0:T(1,128)}', space=vmem, size = 0x12000, scoped, tag = 'internal scratch']
  %s0 = inlined_call_operand.vmem [shape: f32[8,16], index: 0, kind: input, shape index: {}]
  %s1 = inlined_call_operand.hbm [shape: f32[16,32], index: 1, kind: input, shape index: {}]
  %s2 = inlined_call_operand.vmem [shape: f32[1,32], index: 2, kind: input, shape index: {}]
  %s3 = inlined_call_operand.vmem [shape: f32[32,32], index: 3, kind: input, shape index: {}]
  %s4 = inlined_call_operand.vmem [shape: f32[1,32], index: 4, kind: input, shape index: {}]
  %s5 = inlined_call_operand.vmem [shape: f32[32,4], index: 5, kind: input, shape index: {}]
  %s6 = inlined_call_operand.vmem [shape: f32[1,4], index: 6, kind: input, shape index: {}]
  %s7 = inlined_call_operand.vmem [shape: f32[1,4], index: 7, kind: input, shape index: {}]
  %s8 = inlined_call_operand.vmem [shape: f32[1,4], index: 8, kind: input, shape index: {}]
  %s9 = inlined_call_operand.vmem [shape: f32[8,4], index: 9, kind: output, shape index: {}]
  %s10 = sld [smem:[#allocation0]]
  $region50: #{tpu_custom_call.1} parent=0
    _
  %s12 = ssub.s32 1, %s10
  %s13 = scalar_select 0, %s12, %s10
  $region1: #{tpu_custom_call.1} parent=0
    #allocation2 [shape = 'u8[8192]{0}', space=vmem, size = 0x2000, scoped, tag = 'input window, operand 1, single buffered']
    #allocation3 [shape = 's32[1]{0}', space=sflag, size = 0x4, scoped, tag = 'scoped memory for tpu_custom_call.1']
    %14 = vsyncpa [#allocation3], 0
    // Predicated region
    $region2: #{tpu_custom_call.1} parent=1 // pred_check
      _
    $region3: #{tpu_custom_call.1} parent=1 // pred_check_branch
      %16 = sbr.rel (0) target = $region5
    $region4: #{tpu_custom_call.1} parent=1 // pred_region
      _
    $region5: #{tpu_custom_call.1} parent=1 // pred_fallthru
      _
    // Predicated region
    $region6: #{tpu_custom_call.1} parent=1 // pred_check
      _
    $region7: #{tpu_custom_call.1} parent=1 // pred_check_branch
      %18 = sbr.rel (0) target = $region9
    $region8: #{tpu_custom_call.1} parent=1 // pred_region
      %s20 = ssub.s32 256, 256
      %21 = vsyncadd [#allocation3], %s20
      %s22 = sshll.u32 [#allocation2], 4
      %s23 = int_to_ptr.vmem [resolvable:$true] %s22
      %28 = dma.hbm_to_vmem [thread:$0]  %s1, 256, %s23, [#allocation3], 128, 128, 8
    $region9: #{tpu_custom_call.1} parent=1 // pred_fallthru
      _
    // Predicated region
    $region10: #{tpu_custom_call.1} parent=1 // pred_check
      _
    $region11: #{tpu_custom_call.1} parent=1 // pred_check_branch
      %30 = sbr.rel (0) target = $region13
    $region12: #{tpu_custom_call.1} parent=1 // pred_region
      _
    $region13: #{tpu_custom_call.1} parent=1 // pred_fallthru
      _
    // Predicated region
    $region14: #{tpu_custom_call.1} parent=1 // pred_check
      _
    $region15: #{tpu_custom_call.1} parent=1 // pred_check_branch
      %32 = sbr.rel (0) target = $region17
    $region16: #{tpu_custom_call.1} parent=1 // pred_region
      _
    $region17: #{tpu_custom_call.1} parent=1 // pred_fallthru
      _
    // Predicated region
    $region18: #{tpu_custom_call.1} parent=1 // pred_check
      _
    $region19: #{tpu_custom_call.1} parent=1 // pred_check_branch
      %34 = sbr.rel (0) target = $region21
    $region20: #{tpu_custom_call.1} parent=1 // pred_region
      _
    $region21: #{tpu_custom_call.1} parent=1 // pred_fallthru
      _
    // Predicated region
    $region22: #{tpu_custom_call.1} parent=1 // pred_check
      _
    $region23: #{tpu_custom_call.1} parent=1 // pred_check_branch
      %36 = sbr.rel (0) target = $region25
    $region24: #{tpu_custom_call.1} parent=1 // pred_region
      _
    $region25: #{tpu_custom_call.1} parent=1 // pred_fallthru
      _
    // Predicated region
    $region26: #{tpu_custom_call.1} parent=1 // pred_check
      _
    $region27: #{tpu_custom_call.1} parent=1 // pred_check_branch
      %38 = sbr.rel (0) target = $region29
    $region28: #{tpu_custom_call.1} parent=1 // pred_region
      _
    $region29: #{tpu_custom_call.1} parent=1 // pred_fallthru
      _
    // Predicated region
    $region30: #{tpu_custom_call.1} parent=1 // pred_check
      _
    $region31: #{tpu_custom_call.1} parent=1 // pred_check_branch
      %40 = sbr.rel (0) target = $region33
    $region32: #{tpu_custom_call.1} parent=1 // pred_region
      _
    $region33: #{tpu_custom_call.1} parent=1 // pred_fallthru
      _
    // Predicated region
    $region34: #{tpu_custom_call.1} parent=1 // pred_check
      _
    $region35: #{tpu_custom_call.1} parent=1 // pred_check_branch
      %42 = sbr.rel (0) target = $region37
    $region36: #{tpu_custom_call.1} parent=1 // pred_region
      _
    $region37: #{tpu_custom_call.1} parent=1 // pred_fallthru
      _
    // Predicated region
    $region38: #{tpu_custom_call.1} parent=1 // pred_check
      _
    $region39: #{tpu_custom_call.1} parent=1 // pred_check_branch
      %44 = sbr.rel (0) target = $region41
    $region40: #{tpu_custom_call.1} parent=1 // pred_region
      %45 = dma.done [#allocation3], 256
    $region41: #{tpu_custom_call.1} parent=1 // pred_fallthru
      _
    %v46 = vld [vmem:[%s0] sm:$0xff]
    %v47 = vld [vmem:[#allocation2] sm:$0xff]
    %v48 = vld [vmem:[#allocation2 + $0x8] sm:$0xff]
    %v49 = vld [vmem:[%s2] sm:$0x1]
    %v51 = vlaneseq
    %v52 = vshrl.u32 %v51, 7
    %v53 = vsub.s32 0, %v52
    %v54 = vrot.slane %v49, %v53
    %vm56 = vcmask 130048
    %v58 = vsel %vm56, %v46, 0
    %60 = vmatprep.subr.mxu0 0.0
    %61 = vmatpush1.msra.mxu0 %v47
    %62 = vmatprep.subr.mxu0 0.0
    %63 = vmatpush1.msra.mxu0 %v48
    %64 = vmatprep.subr.mxu0 0.0
    %65 = vmatpush1.msra.mxu0 0.0
    %66 = vmatprep.subr.mxu0 0.0
    %67 = vmatpush1.msra.mxu0 0.0
    %68 = vmatprep.subr.mxu0 0.0
    %69 = vmatpush1.msra.mxu0 0.0
    %70 = vmatprep.subr.mxu0 0.0
    %71 = vmatpush1.msra.mxu0 0.0
    %72 = vmatprep.subr.mxu0 0.0
    %73 = vmatpush1.msra.mxu0 0.0
    %74 = vmatprep.subr.mxu0 0.0
    %75 = vmatpush1.msra.mxu0 0.0
    %76 = vmatprep.subr.mxu0 0.0
    %77 = vmatpush1.msra.mxu0 0.0
    %78 = vmatprep.subr.mxu0 0.0
    %79 = vmatpush1.msra.mxu0 0.0
    %80 = vmatprep.subr.mxu0 0.0
    %81 = vmatpush1.msra.mxu0 0.0
    %82 = vmatprep.subr.mxu0 0.0
    %83 = vmatpush1.msra.mxu0 0.0
    %84 = vmatprep.subr.mxu0 0.0
    %85 = vmatpush1.msra.mxu0 0.0
    %86 = vmatprep.subr.mxu0 0.0
    %87 = vmatpush1.msra.mxu0 0.0
    %88 = vmatprep.subr.mxu0 0.0
    %89 = vmatpush1.msra.mxu0 0.0
    %90 = vmatprep.subr.mxu0 0.0
    %91 = vmatpush1.msra.mxu0 0.0
    %92 = vmatprep.subr.mxu0 0.0
    %93 = vmatpush1.msra.mxu0 0.0
    %94 = vmatprep.subr.mxu0 0.0
    %95 = vmatpush1.msra.mxu0 0.0
    %96 = vmatprep.subr.mxu0 0.0
    %97 = vmatpush1.msra.mxu0 0.0
    %98 = vmatprep.subr.mxu0 0.0
    %99 = vmatpush1.msra.mxu0 0.0
    %100 = vmatprep.subr.mxu0 0.0
    %101 = vmatpush1.msra.mxu0 0.0
    %102 = vmatprep.subr.mxu0 0.0
    %103 = vmatpush1.msra.mxu0 0.0
    %104 = vmatprep.subr.mxu0 0.0
    %105 = vmatpush1.msra.mxu0 0.0
    %106 = vmatprep.subr.mxu0 0.0
    %107 = vmatpush1.msra.mxu0 0.0
    %108 = vmatprep.subr.mxu0 0.0
    %109 = vmatpush1.msra.mxu0 0.0
    %110 = vmatprep.subr.mxu0 0.0
    %111 = vmatpush1.msra.mxu0 0.0
    %112 = vmatprep.subr.mxu0 0.0
    %113 = vmatpush1.msra.mxu0 0.0
    %114 = vmatprep.subr.mxu0 0.0
    %115 = vmatpush1.msra.mxu0 0.0
    %116 = vmatprep.subr.mxu0 0.0
    %117 = vmatpush1.msra.mxu0 0.0
    %118 = vmatprep.subr.mxu0 0.0
    %119 = vmatpush1.msra.mxu0 0.0
    %120 = vmatprep.subr.mxu0 0.0
    %121 = vmatpush1.msra.mxu0 0.0
    %122 = vmatprep.subr.mxu0 0.0
    %123 = vmatpush1.msra.mxu0 0.0
    %124 = vmatprep.mubr.f32.mxu0 0.0
    %125 = vmatmul.mubr.f32.gmra.mrb[0].mxu0 %v58
    %v126 = vpop.f32.mrb[0].mxu0
    %v127 = vadd.f32 %v54, %v126
    %v128 = vpop.f32.mrb[0].mxu0
    %129 = vdwg.mxu0
    %vm130 = vcmp.gt.f32.partialorder %v127, 0.0
    %v131 = vmul.f32 %v127, 0.01
    %v132 = vsel %vm130, %v127, %v131
    %v133 = vld [vmem:[%s3] sm:$0xff]
    %v134 = vld [vmem:[%s3 + $0x8] sm:$0xff]
    %v135 = vld [vmem:[%s3 + $0x10] sm:$0xff]
    %v136 = vld [vmem:[%s3 + $0x18] sm:$0xff]
    %v137 = vld [vmem:[%s4] sm:$0x1]
    %v139 = vlaneseq
    %v140 = vshrl.u32 %v139, 7
    %v141 = vsub.s32 0, %v140
    %v142 = vrot.slane %v137, %v141
    %vm144 = vcmask 261120
    %v146 = vsel %vm144, %v132, 0
    %148 = vmatprep.subr.mxu0 0.0
    %149 = vmatpush1.msra.mxu0 %v133
    %150 = vmatprep.subr.mxu0 0.0
    %151 = vmatpush1.msra.mxu0 %v134
    %152 = vmatprep.subr.mxu0 0.0
    %153 = vmatpush1.msra.mxu0 %v135
    %154 = vmatprep.subr.mxu0 0.0
    %155 = vmatpush1.msra.mxu0 %v136
    %156 = vmatprep.subr.mxu0 0.0
    %157 = vmatpush1.msra.mxu0 0.0
    %158 = vmatprep.subr.mxu0 0.0
    %159 = vmatpush1.msra.mxu0 0.0
    %160 = vmatprep.subr.mxu0 0.0
    %161 = vmatpush1.msra.mxu0 0.0
    %162 = vmatprep.subr.mxu0 0.0
    %163 = vmatpush1.msra.mxu0 0.0
    %164 = vmatprep.subr.mxu0 0.0
    %165 = vmatpush1.msra.mxu0 0.0
    %166 = vmatprep.subr.mxu0 0.0
    %167 = vmatpush1.msra.mxu0 0.0
    %168 = vmatprep.subr.mxu0 0.0
    %169 = vmatpush1.msra.mxu0 0.0
    %170 = vmatprep.subr.mxu0 0.0
    %171 = vmatpush1.msra.mxu0 0.0
    %172 = vmatprep.subr.mxu0 0.0
    %173 = vmatpush1.msra.mxu0 0.0
    %174 = vmatprep.subr.mxu0 0.0
    %175 = vmatpush1.msra.mxu0 0.0
    %176 = vmatprep.subr.mxu0 0.0
    %177 = vmatpush1.msra.mxu0 0.0
    %178 = vmatprep.subr.mxu0 0.0
    %179 = vmatpush1.msra.mxu0 0.0
    %180 = vmatprep.subr.mxu0 0.0
    %181 = vmatpush1.msra.mxu0 0.0
    %182 = vmatprep.subr.mxu0 0.0
    %183 = vmatpush1.msra.mxu0 0.0
    %184 = vmatprep.subr.mxu0 0.0
    %185 = vmatpush1.msra.mxu0 0.0
    %186 = vmatprep.subr.mxu0 0.0
    %187 = vmatpush1.msra.mxu0 0.0
    %188 = vmatprep.subr.mxu0 0.0
    %189 = vmatpush1.msra.mxu0 0.0
    %190 = vmatprep.subr.mxu0 0.0
    %191 = vmatpush1.msra.mxu0 0.0
    %192 = vmatprep.subr.mxu0 0.0
    %193 = vmatpush1.msra.mxu0 0.0
    %194 = vmatprep.subr.mxu0 0.0
    %195 = vmatpush1.msra.mxu0 0.0
    %196 = vmatprep.subr.mxu0 0.0
    %197 = vmatpush1.msra.mxu0 0.0
    %198 = vmatprep.subr.mxu0 0.0
    %199 = vmatpush1.msra.mxu0 0.0
    %200 = vmatprep.subr.mxu0 0.0
    %201 = vmatpush1.msra.mxu0 0.0
    %202 = vmatprep.subr.mxu0 0.0
    %203 = vmatpush1.msra.mxu0 0.0
    %204 = vmatprep.subr.mxu0 0.0
    %205 = vmatpush1.msra.mxu0 0.0
    %206 = vmatprep.subr.mxu0 0.0
    %207 = vmatpush1.msra.mxu0 0.0
    %208 = vmatprep.subr.mxu0 0.0
    %209 = vmatpush1.msra.mxu0 0.0
    %210 = vmatprep.subr.mxu0 0.0
    %211 = vmatpush1.msra.mxu0 0.0
    %212 = vmatprep.mubr.f32.mxu0 0.0
    %213 = vmatmul.mubr.f32.gmra.mrb[0].mxu0 %v146
    %v214 = vpop.f32.mrb[0].mxu0
    %v215 = vadd.f32 %v142, %v214
    %v216 = vpop.f32.mrb[0].mxu0
    %217 = vdwg.mxu0
    %vm218 = vcmp.gt.f32.partialorder %v215, 0.0
    %v219 = vmul.f32 %v215, 0.01
    %v220 = vsel %vm218, %v215, %v219
    %v221 = vld [vmem:[%s5] sm:$0xff]
    %v222 = vld [vmem:[%s5 + $0x8] sm:$0xff]
    %v223 = vld [vmem:[%s5 + $0x10] sm:$0xff]
    %v224 = vld [vmem:[%s5 + $0x18] sm:$0xff]
    %v225 = vld [vmem:[%s6] sm:$0x1]
    %v227 = vlaneseq
    %v228 = vshrl.u32 %v227, 7
    %v229 = vsub.s32 0, %v228
    %v230 = vrot.slane %v225, %v229
    %v233 = vsel %vm144, %v220, 0
    %235 = vmatprep.subr.mxu0 0.0
    %236 = vmatpush1.msra.mxu0 %v221
    %237 = vmatprep.subr.mxu0 0.0
    %238 = vmatpush1.msra.mxu0 %v222
    %239 = vmatprep.subr.mxu0 0.0
    %240 = vmatpush1.msra.mxu0 %v223
    %241 = vmatprep.subr.mxu0 0.0
    %242 = vmatpush1.msra.mxu0 %v224
    %243 = vmatprep.subr.mxu0 0.0
    %244 = vmatpush1.msra.mxu0 0.0
    %245 = vmatprep.subr.mxu0 0.0
    %246 = vmatpush1.msra.mxu0 0.0
    %247 = vmatprep.subr.mxu0 0.0
    %248 = vmatpush1.msra.mxu0 0.0
    %249 = vmatprep.subr.mxu0 0.0
    %250 = vmatpush1.msra.mxu0 0.0
    %251 = vmatprep.subr.mxu0 0.0
    %252 = vmatpush1.msra.mxu0 0.0
    %253 = vmatprep.subr.mxu0 0.0
    %254 = vmatpush1.msra.mxu0 0.0
    %255 = vmatprep.subr.mxu0 0.0
    %256 = vmatpush1.msra.mxu0 0.0
    %257 = vmatprep.subr.mxu0 0.0
    %258 = vmatpush1.msra.mxu0 0.0
    %259 = vmatprep.subr.mxu0 0.0
    %260 = vmatpush1.msra.mxu0 0.0
    %261 = vmatprep.subr.mxu0 0.0
    %262 = vmatpush1.msra.mxu0 0.0
    %263 = vmatprep.subr.mxu0 0.0
    %264 = vmatpush1.msra.mxu0 0.0
    %265 = vmatprep.subr.mxu0 0.0
    %266 = vmatpush1.msra.mxu0 0.0
    %267 = vmatprep.subr.mxu0 0.0
    %268 = vmatpush1.msra.mxu0 0.0
    %269 = vmatprep.subr.mxu0 0.0
    %270 = vmatpush1.msra.mxu0 0.0
    %271 = vmatprep.subr.mxu0 0.0
    %272 = vmatpush1.msra.mxu0 0.0
    %273 = vmatprep.subr.mxu0 0.0
    %274 = vmatpush1.msra.mxu0 0.0
    %275 = vmatprep.subr.mxu0 0.0
    %276 = vmatpush1.msra.mxu0 0.0
    %277 = vmatprep.subr.mxu0 0.0
    %278 = vmatpush1.msra.mxu0 0.0
    %279 = vmatprep.subr.mxu0 0.0
    %280 = vmatpush1.msra.mxu0 0.0
    %281 = vmatprep.subr.mxu0 0.0
    %282 = vmatpush1.msra.mxu0 0.0
    %283 = vmatprep.subr.mxu0 0.0
    %284 = vmatpush1.msra.mxu0 0.0
    %285 = vmatprep.subr.mxu0 0.0
    %286 = vmatpush1.msra.mxu0 0.0
    %287 = vmatprep.subr.mxu0 0.0
    %288 = vmatpush1.msra.mxu0 0.0
    %289 = vmatprep.subr.mxu0 0.0
    %290 = vmatpush1.msra.mxu0 0.0
    %291 = vmatprep.subr.mxu0 0.0
    %292 = vmatpush1.msra.mxu0 0.0
    %293 = vmatprep.subr.mxu0 0.0
    %294 = vmatpush1.msra.mxu0 0.0
    %295 = vmatprep.subr.mxu0 0.0
    %296 = vmatpush1.msra.mxu0 0.0
    %297 = vmatprep.subr.mxu0 0.0
    %298 = vmatpush1.msra.mxu0 0.0
    %299 = vmatprep.mubr.f32.mxu0 0.0
    %300 = vmatmul.mubr.f32.gmra.mrb[0].mxu0 %v233
    %v301 = vpop.f32.mrb[0].mxu0
    %v302 = vadd.f32 %v230, %v301
    %v303 = vpop.f32.mrb[0].mxu0
    %304 = vdwg.mxu0
    %v305 = vtanh.pop %v302
    %v306 = vld [vmem:[%s7] sm:$0x1]
    %v308 = vlaneseq
    %v309 = vshrl.u32 %v308, 7
    %v310 = vsub.s32 0, %v309
    %v311 = vrot.slane %v306, %v310
    %v313 = vmul.f32 %v305, %v311
    %v314 = vld [vmem:[%s8] sm:$0x1]
    %v316 = vlaneseq
    %v317 = vshrl.u32 %v316, 7
    %v318 = vsub.s32 0, %v317
    %v319 = vrot.slane %v314, %v318
    %v321 = vadd.f32 %v313, %v319
    %vm322 = vcmask 31744
    %323 = vst.msk [vmem:[%s9] sm:$0xff] %vm322, %v321
    // Predicated region
    $region42: #{tpu_custom_call.1} parent=1 // pred_check
      _
    $region43: #{tpu_custom_call.1} parent=1 // pred_check_branch
      %325 = sbr.rel (0) target = $region45
    $region44: #{tpu_custom_call.1} parent=1 // pred_region
      _
    $region45: #{tpu_custom_call.1} parent=1 // pred_fallthru
      _
    // Predicated region
    $region46: #{tpu_custom_call.1} parent=1 // pred_check
      _
    $region47: #{tpu_custom_call.1} parent=1 // pred_check_branch
      %327 = sbr.rel (0) target = $region49
    $region48: #{tpu_custom_call.1} parent=1 // pred_region
      _
    $region49: #{tpu_custom_call.1} parent=1 // pred_fallthru
      _
    %328 = vsyncpa [#allocation3], 1

</llo_original>
